<compile_context>
chip_gen: v7x
topology: tpu7x:2x2x1
jax: 0.10.0
libtpu: 0.0.40
codegen_flags: <defaults>
</compile_context>

<pallas_src>
import functools

import jax
import jax.numpy as jnp
from jax import lax
from jax.experimental import pallas as pl
from jax.experimental.pallas import tpu as pltpu

BATCH = 8        # number of ODE systems in the demo
STATE_DIM = 4    # y dimensionality
HIDDEN = 32      # nn_correction hidden width
B_TILE = 128     # lane tile: batch block width (use 256 on v6e/v7x when batch is scaled)


# ---------------------------------------------------------------------------
# Parameters (torch.nn.Linear convention) and one-time layout prep
# ---------------------------------------------------------------------------
def make_params(key, state_dim=STATE_DIM, hidden=HIDDEN):
    k = jax.random.split(key, 5)
    scale = 0.1
    A  = scale * jax.random.normal(k[0], (state_dim, state_dim), jnp.float32)   # mech operator
    W1 = scale * jax.random.normal(k[1], (hidden, state_dim + 1), jnp.float32)  # Linear(D+1 -> H)
    b1 = scale * jax.random.normal(k[2], (hidden,), jnp.float32)
    W2 = scale * jax.random.normal(k[3], (state_dim, hidden), jnp.float32)      # Linear(H -> D)
    b2 = scale * jax.random.normal(k[4], (state_dim,), jnp.float32)
    return dict(A=A, W1=W1, b1=b1, W2=W2, b2=b2)


def prep_params(params):
    """One-time layout prep (hoisted out of the per-evaluation path).

    Column-layout convention (batch on the lane axis):
        dydt_cols = A @ y_cols + W2 @ tanh(W1_y @ y_cols + t*W1_t + b1) + b2
    """
    D = params["A"].shape[0]
    A   = params["A"].astype(jnp.float32)                  # (D, D)
    w1y = params["W1"][:, :D].astype(jnp.float32)          # (H, D)   y part of layer 1
    w1t = params["W1"][:, D:D + 1].astype(jnp.float32)     # (H, 1)   t column of layer 1
    b1  = params["b1"].reshape(-1, 1).astype(jnp.float32)  # (H, 1)
    w2  = params["W2"].astype(jnp.float32)                 # (D, H)
    b2  = params["b2"].reshape(-1, 1).astype(jnp.float32)  # (D, 1)
    return A, w1y, w1t, b1, w2, b2


def to_cols(y, b_tile=B_TILE):
    """Row-major (B, D) state -> lane-dense (D, B_pad) column layout. Done ONCE per solve."""
    B, D = y.shape
    Bp = ((B + b_tile - 1) // b_tile) * b_tile
    return jnp.zeros((D, Bp), jnp.float32).at[:, :B].set(y.T.astype(jnp.float32))


def from_cols(y_cols, batch):
    """(D, B_pad) column layout -> row-major (B, D). Done ONCE per solve."""
    return y_cols[:, :batch].T


# ---------------------------------------------------------------------------
# Fused dydt in column layout (rows = state/hidden dims, lanes = batch)
# ---------------------------------------------------------------------------
def _dydt_cols(y, tb_full, a_cols, w1_cols, w2, b2_full):
    """dydt = A@y + W2 @ tanh(W1_y@y + tb) + b2   (all loop-invariants pre-hoisted).

    y:       (D, B)  state columns
    tb_full: (H, B)  materialized t*W1_t + b1 (time-dependent layer-1 bias)
    a_cols:  D arrays of shape (D, 1) — columns of A          (loop-invariant)
    w1_cols: D arrays of shape (H, 1) — columns of W1_y       (loop-invariant)
    w2:      (D, H)
    b2_full: (D, B)  materialized b2                          (loop-invariant)
    """
    acc = b2_full                     # fold the layer-2 bias into the accumulator init
    z = tb_full
    # K = D = 4 contraction: far too small for the MXU -> VPU outer-product accumulation
    # (keeps two MXU push/pops off the serial per-step dependency chain).
    for k, (a_k, w1_k) in enumerate(zip(a_cols, w1_cols)):
        yk = y[k:k + 1, :]            # (1, B) row of the state, sublane-broadcast
        acc = acc + a_k * yk          # mechanistic term:   A @ y
        z = z + w1_k * yk             # MLP layer 1:        W1_y @ y
    h = jnp.tanh(z)                   # EUP slot
    # K = H = 32 contraction stays on the MXU; N = B is lane-dense.
    return acc + jnp.dot(w2, h, preferred_element_type=jnp.float32)


# ---------------------------------------------------------------------------
# Kernels
# ---------------------------------------------------------------------------
def hybrid_dydt_kernel(t_ref, y_ref, a_ref, w1y_ref, w1t_ref, b1_ref,
                       w2_ref, b2_ref, out_ref):
    """HybridODE.forward: out = mech_model(t, y) + nn_correction(t, y), column layout."""
    D, B = y_ref.shape
    H = w2_ref.shape[1]
    t = t_ref[0]

    a = a_ref[...]
    w1y = w1y_ref[...]
    a_cols = [a[:, k:k + 1] for k in range(D)]
    w1_cols = [w1y[:, k:k + 1] for k in range(D)]
    b2_full = jnp.broadcast_to(b2_ref[...], (D, B))
    tb_full = jnp.broadcast_to(t * w1t_ref[...] + b1_ref[...], (H, B))

    out = _dydt_cols(y_ref[...], tb_full, a_cols, w1_cols, w2_ref[...], b2_full)
    out_ref[...] = out.astype(out_ref.dtype)          # lane-dense (unmasked) store


def hybrid_euler_kernel(ts_ref, y0_ref, a_ref, w1y_ref, w1t_ref, b1_ref,
                        w2_ref, b2_ref, out_ref, *, num_steps, unroll):
    """Fused explicit-Euler solve: the time-stepping loop lives inside ONE pallas_call."""
    D, B = y0_ref.shape
    H = w2_ref.shape[1]
    t0 = ts_ref[0]
    dt = ts_ref[1]

    # --- loop-invariant hoists: weight loads, column slices, bias broadcasts ---
    a = a_ref[...]
    w1y = w1y_ref[...]
    a_cols = [a[:, k:k + 1] for k in range(D)]
    w1_cols = [w1y[:, k:k + 1] for k in range(D)]
    w2 = w2_ref[...]
    b2_full = jnp.broadcast_to(b2_ref[...], (D, B))
    # Strength-reduced time term: tb(t) = t*W1_t + b1 is carried in the loop state and
    # incremented by dt*W1_t (no per-step i->f32 cast, scalar mul, or re-broadcast).
    tb0 = jnp.broadcast_to(t0 * w1t_ref[...] + b1_ref[...], (H, B))
    tb_incr = jnp.broadcast_to(dt * w1t_ref[...], (H, B))

    def step(_, carry):
        y, tb = carry
        y = y + dt * _dydt_cols(y, tb, a_cols, w1_cols, w2, b2_full)
        return y, tb + tb_incr

    yT, _ = lax.fori_loop(0, num_steps, step, (y0_ref[...], tb0), unroll=unroll)
    out_ref[...] = yT.astype(out_ref.dtype)            # single lane-dense write-back


# ---------------------------------------------------------------------------
# Wrappers (pallas_call; grid over 128-lane batch blocks, weights resident)
# ---------------------------------------------------------------------------
def _smem_spec(n):
    return pl.BlockSpec((n,), lambda i: (0,), memory_space=pltpu.MemorySpace.SMEM)


def _weight_spec(shape):
    return pl.BlockSpec(shape, lambda i: (0, 0))        # same block every step: resident


def _state_spec(d, b_tile):
    return pl.BlockSpec((d, b_tile), lambda i: (0, i))  # batch-blocked along lanes


def _cost(bp, d, h, steps):
    flops = 2 * bp * (d * d + h * d + d * h) * steps
    bytes_accessed = 4 * (d * d + h * d + 2 * h + d * h + d + 2 * d * bp + 2)
    return pl.CostEstimate(flops=flops, transcendentals=bp * h * steps,
                           bytes_accessed=bytes_accessed)


@jax.jit
def hybrid_ode_forward_cols(t, y_cols, A, w1y, w1t, b1, w2, b2):
    """HybridODE.forward(t, y) with the state kept in (D, B_pad) column layout."""
    D, Bp = y_cols.shape
    H = w2.shape[1]
    t_arr = jnp.reshape(jnp.asarray(t, jnp.float32), (1,))
    return pl.pallas_call(
        hybrid_dydt_kernel,
        out_shape=jax.ShapeDtypeStruct((D, Bp), jnp.float32),
        grid=(Bp // B_TILE,),
        in_specs=[_smem_spec(1),
                  _state_spec(D, B_TILE),
                  _weight_spec((D, D)), _weight_spec((H, D)),
                  _weight_spec((H, 1)), _weight_spec((H, 1)),
                  _weight_spec((D, H)), _weight_spec((D, 1))],
        out_specs=_state_spec(D, B_TILE),
        compiler_params=pltpu.CompilerParams(dimension_semantics=("parallel",)),
        cost_estimate=_cost(Bp, D, H, 1),
    )(t_arr, y_cols, A, w1y, w1t, b1, w2, b2)


@functools.partial(jax.jit, static_argnums=(2,))
def hybrid_ode_integrate_euler_cols(t0, dt, num_steps, y0_cols, A, w1y, w1t, b1, w2, b2):
    """num_steps explicit-Euler steps fully fused into one kernel call (column layout)."""
    D, Bp = y0_cols.shape
    H = w2.shape[1]
    ts = jnp.stack([jnp.asarray(t0, jnp.float32), jnp.asarray(dt, jnp.float32)])
    unroll = max(1, min(4, num_steps))                  # static partial unroll
    kern = functools.partial(hybrid_euler_kernel, num_steps=num_steps, unroll=unroll)
    return pl.pallas_call(
        kern,
        out_shape=jax.ShapeDtypeStruct((D, Bp), jnp.float32),
        grid=(Bp // B_TILE,),
        in_specs=[_smem_spec(2),
                  _state_spec(D, B_TILE),
                  _weight_spec((D, D)), _weight_spec((H, D)),
                  _weight_spec((H, 1)), _weight_spec((H, 1)),
                  _weight_spec((D, H)), _weight_spec((D, 1))],
        out_specs=_state_spec(D, B_TILE),
        compiler_params=pltpu.CompilerParams(dimension_semantics=("parallel",)),
        cost_estimate=_cost(Bp, D, H, num_steps),
    )(ts, y0_cols, A, w1y, w1t, b1, w2, b2)


# ---------------------------------------------------------------------------
# Pure-JAX references (PyTorch semantics)
# ---------------------------------------------------------------------------
def reference_forward(t, y, params):
    dydt_mech = y @ params["A"].T
    aug = jnp.concatenate([y, jnp.full((y.shape[0], 1), t, y.dtype)], axis=-1)
    h = jnp.tanh(aug @ params["W1"].T + params["b1"])
    dydt_nn = h @ params["W2"].T + params["b2"]
    return dydt_mech + dydt_nn


def reference_integrate_euler(t0, dt, num_steps, y0, params):
    y = y0
    for i in range(num_steps):
        y = y + dt * reference_forward(t0 + dt * i, y, params)
    return y


if __name__ == "__main__":
    key = jax.random.PRNGKey(0)
    k_param, k_y = jax.random.split(key)

    params = make_params(k_param)
    weights = prep_params(params)                 # hoisted: layout prep done once

    y = jax.random.normal(k_y, (BATCH, STATE_DIM), jnp.float32)
    t = jnp.float32(0.5)

    # state is converted to lane-dense column layout ONCE and kept there for the solve
    y_cols = to_cols(y)

    # --- single dydt evaluation (HybridODE.forward semantics) ---
    out_cols = hybrid_ode_forward_cols(t, y_cols, *weights)
    out_cols = jax.block_until_ready(out_cols)
    out = from_cols(out_cols, BATCH)
    ref = reference_forward(t, y, params)
    assert out.shape == (BATCH, STATE_DIM)
    assert jnp.allclose(out, ref, atol=1e-5, rtol=1e-5), "dydt mismatch vs reference"

    # --- fused multi-step Euler solve (stepping loop inside the kernel) ---
    t0 = jnp.float32(0.0)
    dt = jnp.float32(0.05)
    num_steps = 8
    yT_cols = hybrid_ode_integrate_euler_cols(t0, dt, num_steps, y_cols, *weights)
    yT_cols = jax.block_until_ready(yT_cols)
    yT = from_cols(yT_cols, BATCH)
    refT = reference_integrate_euler(t0, dt, num_steps, y, params)
    assert yT.shape == (BATCH, STATE_DIM)
    assert jnp.allclose(yT, refT, atol=1e-4, rtol=1e-4), "Euler solve mismatch vs reference"

    print("KERNEL_OK")
</pallas_src>

<mosaic_0001>
module attributes {stable_mosaic.version = 11 : i64} {
  func.func @hybrid_dydt_kernel(%arg0: i32, %arg1: memref<1xf32, #tpu.memory_space<smem>>, %arg2: memref<4x128xf32, #tpu.memory_space<vmem>>, %arg3: memref<4x4xf32, #tpu.memory_space<vmem>>, %arg4: memref<32x4xf32, #tpu.memory_space<vmem>>, %arg5: memref<32x1xf32, #tpu.memory_space<vmem>>, %arg6: memref<32x1xf32, #tpu.memory_space<vmem>>, %arg7: memref<4x32xf32, #tpu.memory_space<vmem>>, %arg8: memref<4x1xf32, #tpu.memory_space<vmem>>, %arg9: memref<4x128xf32, #tpu.memory_space<vmem>>) attributes {dimension_semantics = [#tpu.dimension_semantics<parallel>], iteration_bounds = array<i64: 1>, scalar_prefetch = 0 : i64, scratch_operands = 0 : i64, tpu.core_type = #tpu.core_type<tc>, window_params = [{transform_indices = @transform_0, window_bounds = array<i64: 1>}, {transform_indices = @transform_1, window_bounds = array<i64: 4, 128>}, {pipeline_mode = #tpu.pipeline_mode<synchronous>, transform_indices = @transform_2, window_bounds = array<i64: 4, 4>}, {pipeline_mode = #tpu.pipeline_mode<synchronous>, transform_indices = @transform_3, window_bounds = array<i64: 32, 4>}, {pipeline_mode = #tpu.pipeline_mode<synchronous>, transform_indices = @transform_4, window_bounds = array<i64: 32, 1>}, {pipeline_mode = #tpu.pipeline_mode<synchronous>, transform_indices = @transform_5, window_bounds = array<i64: 32, 1>}, {pipeline_mode = #tpu.pipeline_mode<synchronous>, transform_indices = @transform_6, window_bounds = array<i64: 4, 32>}, {pipeline_mode = #tpu.pipeline_mode<synchronous>, transform_indices = @transform_7, window_bounds = array<i64: 4, 1>}, {transform_indices = @transform_8, window_bounds = array<i64: 4, 128>}]} {
    %c0 = arith.constant 0 : index
    %0 = memref.load %arg1[%c0] : memref<1xf32, #tpu.memory_space<smem>>
    %c0_0 = arith.constant 0 : index
    %c0_1 = arith.constant 0 : index
    %1 = vector.load %arg3[%c0_0, %c0_1] : memref<4x4xf32, #tpu.memory_space<vmem>>, vector<4x4xf32>
    %c0_2 = arith.constant 0 : index
    %c0_3 = arith.constant 0 : index
    %2 = vector.load %arg4[%c0_2, %c0_3] : memref<32x4xf32, #tpu.memory_space<vmem>>, vector<32x4xf32>
    %3 = vector.extract_strided_slice %1 {offsets = [0, 0], sizes = [4, 1], strides = [1, 1]} : vector<4x4xf32> to vector<4x1xf32>
    %4 = vector.extract_strided_slice %1 {offsets = [0, 1], sizes = [4, 1], strides = [1, 1]} : vector<4x4xf32> to vector<4x1xf32>
    %5 = vector.extract_strided_slice %1 {offsets = [0, 2], sizes = [4, 1], strides = [1, 1]} : vector<4x4xf32> to vector<4x1xf32>
    %6 = vector.extract_strided_slice %1 {offsets = [0, 3], sizes = [4, 1], strides = [1, 1]} : vector<4x4xf32> to vector<4x1xf32>
    %7 = vector.extract_strided_slice %2 {offsets = [0, 0], sizes = [32, 1], strides = [1, 1]} : vector<32x4xf32> to vector<32x1xf32>
    %8 = vector.extract_strided_slice %2 {offsets = [0, 1], sizes = [32, 1], strides = [1, 1]} : vector<32x4xf32> to vector<32x1xf32>
    %9 = vector.extract_strided_slice %2 {offsets = [0, 2], sizes = [32, 1], strides = [1, 1]} : vector<32x4xf32> to vector<32x1xf32>
    %10 = vector.extract_strided_slice %2 {offsets = [0, 3], sizes = [32, 1], strides = [1, 1]} : vector<32x4xf32> to vector<32x1xf32>
    %c0_4 = arith.constant 0 : index
    %c0_5 = arith.constant 0 : index
    %11 = vector.load %arg8[%c0_4, %c0_5] : memref<4x1xf32, #tpu.memory_space<vmem>>, vector<4x1xf32>
    %12 = vector.shape_cast %11 : vector<4x1xf32> to vector<4x1xf32>
    %13 = vector.broadcast %12 : vector<4x1xf32> to vector<4x128xf32>
    %c0_6 = arith.constant 0 : index
    %c0_7 = arith.constant 0 : index
    %14 = vector.load %arg5[%c0_6, %c0_7] : memref<32x1xf32, #tpu.memory_space<vmem>>, vector<32x1xf32>
    %15 = vector.broadcast %0 : f32 to vector<32x1xf32>
    %16 = arith.mulf %15, %14 : vector<32x1xf32>
    %c0_8 = arith.constant 0 : index
    %c0_9 = arith.constant 0 : index
    %17 = vector.load %arg6[%c0_8, %c0_9] : memref<32x1xf32, #tpu.memory_space<vmem>>, vector<32x1xf32>
    %18 = arith.addf %16, %17 : vector<32x1xf32>
    %19 = vector.shape_cast %18 : vector<32x1xf32> to vector<32x1xf32>
    %20 = vector.broadcast %19 : vector<32x1xf32> to vector<32x128xf32>
    %c0_10 = arith.constant 0 : index
    %c0_11 = arith.constant 0 : index
    %21 = vector.load %arg2[%c0_10, %c0_11] : memref<4x128xf32, #tpu.memory_space<vmem>>, vector<4x128xf32>
    %c0_12 = arith.constant 0 : index
    %c0_13 = arith.constant 0 : index
    %22 = vector.load %arg7[%c0_12, %c0_13] : memref<4x32xf32, #tpu.memory_space<vmem>>, vector<4x32xf32>
    %23 = vector.extract_strided_slice %21 {offsets = [0, 0], sizes = [1, 128], strides = [1, 1]} : vector<4x128xf32> to vector<1x128xf32>
    %24 = vector.broadcast %3 : vector<4x1xf32> to vector<4x128xf32>
    %25 = vector.broadcast %23 : vector<1x128xf32> to vector<4x128xf32>
    %26 = arith.mulf %24, %25 : vector<4x128xf32>
    %27 = arith.addf %13, %26 : vector<4x128xf32>
    %28 = vector.broadcast %7 : vector<32x1xf32> to vector<32x128xf32>
    %29 = vector.broadcast %23 : vector<1x128xf32> to vector<32x128xf32>
    %30 = arith.mulf %28, %29 : vector<32x128xf32>
    %31 = arith.addf %20, %30 : vector<32x128xf32>
    %32 = vector.extract_strided_slice %21 {offsets = [1, 0], sizes = [1, 128], strides = [1, 1]} : vector<4x128xf32> to vector<1x128xf32>
    %33 = vector.broadcast %4 : vector<4x1xf32> to vector<4x128xf32>
    %34 = vector.broadcast %32 : vector<1x128xf32> to vector<4x128xf32>
    %35 = arith.mulf %33, %34 : vector<4x128xf32>
    %36 = arith.addf %27, %35 : vector<4x128xf32>
    %37 = vector.broadcast %8 : vector<32x1xf32> to vector<32x128xf32>
    %38 = vector.broadcast %32 : vector<1x128xf32> to vector<32x128xf32>
    %39 = arith.mulf %37, %38 : vector<32x128xf32>
    %40 = arith.addf %31, %39 : vector<32x128xf32>
    %41 = vector.extract_strided_slice %21 {offsets = [2, 0], sizes = [1, 128], strides = [1, 1]} : vector<4x128xf32> to vector<1x128xf32>
    %42 = vector.broadcast %5 : vector<4x1xf32> to vector<4x128xf32>
    %43 = vector.broadcast %41 : vector<1x128xf32> to vector<4x128xf32>
    %44 = arith.mulf %42, %43 : vector<4x128xf32>
    %45 = arith.addf %36, %44 : vector<4x128xf32>
    %46 = vector.broadcast %9 : vector<32x1xf32> to vector<32x128xf32>
    %47 = vector.broadcast %41 : vector<1x128xf32> to vector<32x128xf32>
    %48 = arith.mulf %46, %47 : vector<32x128xf32>
    %49 = arith.addf %40, %48 : vector<32x128xf32>
    %50 = vector.extract_strided_slice %21 {offsets = [3, 0], sizes = [1, 128], strides = [1, 1]} : vector<4x128xf32> to vector<1x128xf32>
    %51 = vector.broadcast %6 : vector<4x1xf32> to vector<4x128xf32>
    %52 = vector.broadcast %50 : vector<1x128xf32> to vector<4x128xf32>
    %53 = arith.mulf %51, %52 : vector<4x128xf32>
    %54 = arith.addf %45, %53 : vector<4x128xf32>
    %55 = vector.broadcast %10 : vector<32x1xf32> to vector<32x128xf32>
    %56 = vector.broadcast %50 : vector<1x128xf32> to vector<32x128xf32>
    %57 = arith.mulf %55, %56 : vector<32x128xf32>
    %58 = arith.addf %49, %57 : vector<32x128xf32>
    %59 = math.tanh %58 : vector<32x128xf32>
    %cst = arith.constant dense<0.000000e+00> : vector<4x128xf32>
    %60 = tpu.matmul %22, %59, %cst {dimension_numbers = #tpu.dot_dimension_numbers<[1], [0], [0], [1], [0, 0, 1, 1], [], []>} : vector<4x32xf32>, vector<32x128xf32>, vector<4x128xf32> -> vector<4x128xf32>
    %61 = arith.addf %54, %60 : vector<4x128xf32>
    %c0_14 = arith.constant 0 : index
    %c0_15 = arith.constant 0 : index
    %62 = vector.load %arg9[%c0_14, %c0_15] : memref<4x128xf32, #tpu.memory_space<vmem>>, vector<4x128xf32>
    tpu.vector_store %arg9[%c0_14, %c0_15], %61 {strides = array<i32>} : memref<4x128xf32, #tpu.memory_space<vmem>>, vector<4x128xf32>,
    return
  }
  func.func @transform_0(%arg0: i32) -> i32 {
    %c0_i32 = arith.constant 0 : i32
    %c0_i32_0 = arith.constant 0 : i32
    return %c0_i32 : i32
  }
  func.func @transform_1(%arg0: i32) -> (i32, i32) {
    %c0_i32 = arith.constant 0 : i32
    %c0_i32_0 = arith.constant 0 : i32
    return %c0_i32, %arg0 : i32, i32
  }
  func.func @transform_2(%arg0: i32) -> (i32, i32) {
    %c0_i32 = arith.constant 0 : i32
    %c0_i32_0 = arith.constant 0 : i32
    %c0_i32_1 = arith.constant 0 : i32
    return %c0_i32, %c0_i32_0 : i32, i32
  }
  func.func @transform_3(%arg0: i32) -> (i32, i32) {
    %c0_i32 = arith.constant 0 : i32
    %c0_i32_0 = arith.constant 0 : i32
    %c0_i32_1 = arith.constant 0 : i32
    return %c0_i32, %c0_i32_0 : i32, i32
  }
  func.func @transform_4(%arg0: i32) -> (i32, i32) {
    %c0_i32 = arith.constant 0 : i32
    %c0_i32_0 = arith.constant 0 : i32
    %c0_i32_1 = arith.constant 0 : i32
    return %c0_i32, %c0_i32_0 : i32, i32
  }
  func.func @transform_5(%arg0: i32) -> (i32, i32) {
    %c0_i32 = arith.constant 0 : i32
    %c0_i32_0 = arith.constant 0 : i32
    %c0_i32_1 = arith.constant 0 : i32
    return %c0_i32, %c0_i32_0 : i32, i32
  }
  func.func @transform_6(%arg0: i32) -> (i32, i32) {
    %c0_i32 = arith.constant 0 : i32
    %c0_i32_0 = arith.constant 0 : i32
    %c0_i32_1 = arith.constant 0 : i32
    return %c0_i32, %c0_i32_0 : i32, i32
  }
  func.func @transform_7(%arg0: i32) -> (i32, i32) {
    %c0_i32 = arith.constant 0 : i32
    %c0_i32_0 = arith.constant 0 : i32
    %c0_i32_1 = arith.constant 0 : i32
    return %c0_i32, %c0_i32_0 : i32, i32
  }
  func.func @transform_8(%arg0: i32) -> (i32, i32) {
    %c0_i32 = arith.constant 0 : i32
    %c0_i32_0 = arith.constant 0 : i32
    return %c0_i32, %arg0 : i32, i32
  }
}

</mosaic_0001>

<llo_original>
// kernel: hybrid_ode_forward_cols.1
$region0: #{hybrid_ode_forward_cols.1}
  #allocation0 [shape = 'u32[]', space=smem, size = 0x4, offset = 0x4, fixed_abs, tag = 'smem constant byte address 0x4 - core index']
  #allocation1 [shape = 'u32[144,128]{1,0:T(1,128)}', space=vmem, size = 0x12000, scoped, tag = 'internal scratch']
  #allocation2 [shape = 'f32[1]{0:T(128)S(6)}', space=smem, size = 0x200, scoped, tag = 'scoped memory for hybrid_ode_forward_cols.1']
  %s0 = inlined_call_operand.<no memory space> [shape: f32[1], index: 0, kind: input, shape index: {}]
  %s1 = inlined_call_operand.vmem [shape: f32[4,128], index: 1, kind: input, shape index: {}]
  %s2 = inlined_call_operand.vmem [shape: f32[4,4], index: 2, kind: input, shape index: {}]
  %s3 = inlined_call_operand.vmem [shape: f32[32,4], index: 3, kind: input, shape index: {}]
  %s4 = inlined_call_operand.vmem [shape: f32[32,1], index: 4, kind: input, shape index: {}]
  %s5 = inlined_call_operand.vmem [shape: f32[32,1], index: 5, kind: input, shape index: {}]
  %s6 = inlined_call_operand.vmem [shape: f32[4,32], index: 6, kind: input, shape index: {}]
  %s7 = inlined_call_operand.vmem [shape: f32[4,1], index: 7, kind: input, shape index: {}]
  %s8 = inlined_call_operand.hbm [shape: f32[4,128], index: 8, kind: output, shape index: {}]
  %s9 = sld [smem:[#allocation0]]
  $region42: #{hybrid_ode_forward_cols.1} parent=0
    _
  %s11 = ssub.s32 1, %s9
  %s12 = scalar_select 0, %s11, %s9
  %13 = sst [smem:[#allocation2]] %s0
  $region1: #{hybrid_ode_forward_cols.1} parent=0
    #allocation3 [shape = 'u8[2048]{0}', space=vmem, size = 0x800, scoped, tag = 'output window, operand 0, single buffered']
    #allocation4 [shape = 's32[1]{0}', space=sflag, size = 0x4, scoped, tag = 'scoped memory for hybrid_ode_forward_cols.1']
    %14 = vsyncpa [#allocation4], 0
    // Predicated region
    $region2: #{hybrid_ode_forward_cols.1} parent=1 // pred_check
      _
    $region3: #{hybrid_ode_forward_cols.1} parent=1 // pred_check_branch
      %16 = sbr.rel (0) target = $region5
    $region4: #{hybrid_ode_forward_cols.1} parent=1 // pred_region
      _
    $region5: #{hybrid_ode_forward_cols.1} parent=1 // pred_fallthru
      _
    // Predicated region
    $region6: #{hybrid_ode_forward_cols.1} parent=1 // pred_check
      _
    $region7: #{hybrid_ode_forward_cols.1} parent=1 // pred_check_branch
      %18 = sbr.rel (0) target = $region9
    $region8: #{hybrid_ode_forward_cols.1} parent=1 // pred_region
      _
    $region9: #{hybrid_ode_forward_cols.1} parent=1 // pred_fallthru
      _
    // Predicated region
    $region10: #{hybrid_ode_forward_cols.1} parent=1 // pred_check
      _
    $region11: #{hybrid_ode_forward_cols.1} parent=1 // pred_check_branch
      %20 = sbr.rel (0) target = $region13
    $region12: #{hybrid_ode_forward_cols.1} parent=1 // pred_region
      _
    $region13: #{hybrid_ode_forward_cols.1} parent=1 // pred_fallthru
      _
    // Predicated region
    $region14: #{hybrid_ode_forward_cols.1} parent=1 // pred_check
      _
    $region15: #{hybrid_ode_forward_cols.1} parent=1 // pred_check_branch
      %22 = sbr.rel (0) target = $region17
    $region16: #{hybrid_ode_forward_cols.1} parent=1 // pred_region
      _
    $region17: #{hybrid_ode_forward_cols.1} parent=1 // pred_fallthru
      _
    // Predicated region
    $region18: #{hybrid_ode_forward_cols.1} parent=1 // pred_check
      _
    $region19: #{hybrid_ode_forward_cols.1} parent=1 // pred_check_branch
      %24 = sbr.rel (0) target = $region21
    $region20: #{hybrid_ode_forward_cols.1} parent=1 // pred_region
      _
    $region21: #{hybrid_ode_forward_cols.1} parent=1 // pred_fallthru
      _
    // Predicated region
    $region22: #{hybrid_ode_forward_cols.1} parent=1 // pred_check
      _
    $region23: #{hybrid_ode_forward_cols.1} parent=1 // pred_check_branch
      %26 = sbr.rel (0) target = $region25
    $region24: #{hybrid_ode_forward_cols.1} parent=1 // pred_region
      _
    $region25: #{hybrid_ode_forward_cols.1} parent=1 // pred_fallthru
      _
    // Predicated region
    $region26: #{hybrid_ode_forward_cols.1} parent=1 // pred_check
      _
    $region27: #{hybrid_ode_forward_cols.1} parent=1 // pred_check_branch
      %28 = sbr.rel (0) target = $region29
    $region28: #{hybrid_ode_forward_cols.1} parent=1 // pred_region
      _
    $region29: #{hybrid_ode_forward_cols.1} parent=1 // pred_fallthru
      _
    // Predicated region
    $region30: #{hybrid_ode_forward_cols.1} parent=1 // pred_check
      _
    $region31: #{hybrid_ode_forward_cols.1} parent=1 // pred_check_branch
      %30 = sbr.rel (0) target = $region33
    $region32: #{hybrid_ode_forward_cols.1} parent=1 // pred_region
      _
    $region33: #{hybrid_ode_forward_cols.1} parent=1 // pred_fallthru
      _
    %s31 = sld [smem:[#allocation2]]
    %v32 = vld [vmem:[%s2] sm:$0xf]
    %v33 = vld [vmem:[%s3] sm:$0xff]
    %v34 = vld [vmem:[%s3 + $0x8] sm:$0xff]
    %v35 = vld [vmem:[%s3 + $0x10] sm:$0xff]
    %v36 = vld [vmem:[%s3 + $0x18] sm:$0xff]
    %v37 = vld [vmem:[%s7] sm:$0xf]
    %39 = vset.pattern.permute.xlu0 0
    %40 = vperm.xlu0 %39, %v37
    %v41 = vpop.permute.xlu0 %40
    %v43 = vld [vmem:[%s4] sm:$0xff]
    %v44 = vld [vmem:[%s4 + $0x8] sm:$0xff]
    %v45 = vld [vmem:[%s4 + $0x10] sm:$0xff]
    %v46 = vld [vmem:[%s4 + $0x18] sm:$0xff]
    %v47 = vstv %s31
    %v48 = vmul.f32 %v47, %v43
    %v49 = vmul.f32 %v47, %v44
    %v50 = vmul.f32 %v47, %v45
    %v51 = vmul.f32 %v47, %v46
    %v52 = vld [vmem:[%s5] sm:$0xff]
    %v53 = vld [vmem:[%s5 + $0x8] sm:$0xff]
    %v54 = vld [vmem:[%s5 + $0x10] sm:$0xff]
    %v55 = vld [vmem:[%s5 + $0x18] sm:$0xff]
    %v56 = vadd.f32 %v48, %v52
    %v57 = vadd.f32 %v49, %v53
    %v58 = vadd.f32 %v50, %v54
    %v59 = vadd.f32 %v51, %v55
    %61 = vset.pattern.permute.xlu0 0
    %62 = vperm.xlu0 %61, %v56
    %v63 = vpop.permute.xlu0 %62
    %66 = vset.pattern.permute.xlu0 0
    %67 = vperm.xlu0 %66, %v57
    %v68 = vpop.permute.xlu0 %67
    %71 = vset.pattern.permute.xlu0 0
    %72 = vperm.xlu0 %71, %v58
    %v73 = vpop.permute.xlu0 %72
    %76 = vset.pattern.permute.xlu0 0
    %77 = vperm.xlu0 %76, %v59
    %v78 = vpop.permute.xlu0 %77
    %v80 = vld [vmem:[%s1] sm:$0xf]
    %v81 = vld [vmem:[%s6] sm:$0xf]
    %83 = vset.pattern.permute.xlu0 0
    %84 = vperm.xlu0 %83, %v32
    %v85 = vpop.permute.xlu0 %84
    %v87 = vlaneseq
    %v88 = vshrl.u32 %v87, 7
    %v89 = vsub.s32 0, %v88
    %v90 = vrot.slane %v80, %v89
    %v91 = vmul.f32 %v85, %v90
    %v92 = vadd.f32 %v41, %v91
    %94 = vset.pattern.permute.xlu0 0
    %95 = vperm.xlu0 %94, %v33
    %v96 = vpop.permute.xlu0 %95
    %99 = vset.pattern.permute.xlu0 0
    %100 = vperm.xlu0 %99, %v34
    %v101 = vpop.permute.xlu0 %100
    %104 = vset.pattern.permute.xlu0 0
    %105 = vperm.xlu0 %104, %v35
    %v106 = vpop.permute.xlu0 %105
    %109 = vset.pattern.permute.xlu0 0
    %110 = vperm.xlu0 %109, %v36
    %v111 = vpop.permute.xlu0 %110
    %v113 = vmul.f32 %v96, %v90
    %v114 = vmul.f32 %v101, %v90
    %v115 = vmul.f32 %v106, %v90
    %v116 = vmul.f32 %v111, %v90
    %v117 = vadd.f32 %v63, %v113
    %v118 = vadd.f32 %v68, %v114
    %v119 = vadd.f32 %v73, %v115
    %v120 = vadd.f32 %v78, %v116
    %121 = vset.pattern.permute.xlu0 1
    %122 = vperm.xlu0 %121, %v32
    %v123 = vpop.permute.xlu0 %122
    %v125 = vlaneseq
    %v126 = vshrl.u32 %v125, 7
    %v127 = vsub.s32 1, %v126
    %v128 = vrot.slane %v80, %v127
    %v129 = vmul.f32 %v123, %v128
    %v130 = vadd.f32 %v92, %v129
    %131 = vset.pattern.permute.xlu0 1
    %132 = vperm.xlu0 %131, %v33
    %v133 = vpop.permute.xlu0 %132
    %135 = vset.pattern.permute.xlu0 1
    %136 = vperm.xlu0 %135, %v34
    %v137 = vpop.permute.xlu0 %136
    %139 = vset.pattern.permute.xlu0 1
    %140 = vperm.xlu0 %139, %v35
    %v141 = vpop.permute.xlu0 %140
    %143 = vset.pattern.permute.xlu0 1
    %144 = vperm.xlu0 %143, %v36
    %v145 = vpop.permute.xlu0 %144
    %v147 = vmul.f32 %v133, %v128
    %v148 = vmul.f32 %v137, %v128
    %v149 = vmul.f32 %v141, %v128
    %v150 = vmul.f32 %v145, %v128
    %v151 = vadd.f32 %v117, %v147
    %v152 = vadd.f32 %v118, %v148
    %v153 = vadd.f32 %v119, %v149
    %v154 = vadd.f32 %v120, %v150
    %155 = vset.pattern.permute.xlu0 2
    %156 = vperm.xlu0 %155, %v32
    %v157 = vpop.permute.xlu0 %156
    %v159 = vlaneseq
    %v160 = vshrl.u32 %v159, 7
    %v161 = vsub.s32 2, %v160
    %v162 = vrot.slane %v80, %v161
    %v163 = vmul.f32 %v157, %v162
    %v164 = vadd.f32 %v130, %v163
    %165 = vset.pattern.permute.xlu0 2
    %166 = vperm.xlu0 %165, %v33
    %v167 = vpop.permute.xlu0 %166
    %169 = vset.pattern.permute.xlu0 2
    %170 = vperm.xlu0 %169, %v34
    %v171 = vpop.permute.xlu0 %170
    %173 = vset.pattern.permute.xlu0 2
    %174 = vperm.xlu0 %173, %v35
    %v175 = vpop.permute.xlu0 %174
    %177 = vset.pattern.permute.xlu0 2
    %178 = vperm.xlu0 %177, %v36
    %v179 = vpop.permute.xlu0 %178
    %v181 = vmul.f32 %v167, %v162
    %v182 = vmul.f32 %v171, %v162
    %v183 = vmul.f32 %v175, %v162
    %v184 = vmul.f32 %v179, %v162
    %v185 = vadd.f32 %v151, %v181
    %v186 = vadd.f32 %v152, %v182
    %v187 = vadd.f32 %v153, %v183
    %v188 = vadd.f32 %v154, %v184
    %189 = vset.pattern.permute.xlu0 3
    %190 = vperm.xlu0 %189, %v32
    %v191 = vpop.permute.xlu0 %190
    %v193 = vlaneseq
    %v194 = vshrl.u32 %v193, 7
    %v195 = vsub.s32 3, %v194
    %v196 = vrot.slane %v80, %v195
    %v197 = vmul.f32 %v191, %v196
    %v198 = vadd.f32 %v164, %v197
    %199 = vset.pattern.permute.xlu0 3
    %200 = vperm.xlu0 %199, %v33
    %v201 = vpop.permute.xlu0 %200
    %203 = vset.pattern.permute.xlu0 3
    %204 = vperm.xlu0 %203, %v34
    %v205 = vpop.permute.xlu0 %204
    %207 = vset.pattern.permute.xlu0 3
    %208 = vperm.xlu0 %207, %v35
    %v209 = vpop.permute.xlu0 %208
    %211 = vset.pattern.permute.xlu0 3
    %212 = vperm.xlu0 %211, %v36
    %v213 = vpop.permute.xlu0 %212
    %v215 = vmul.f32 %v201, %v196
    %v216 = vmul.f32 %v205, %v196
    %v217 = vmul.f32 %v209, %v196
    %v218 = vmul.f32 %v213, %v196
    %v219 = vadd.f32 %v185, %v215
    %v220 = vadd.f32 %v186, %v216
    %v221 = vadd.f32 %v187, %v217
    %v222 = vadd.f32 %v188, %v218
    %v223 = vtanh.pop %v219
    %v224 = vtanh.pop %v220
    %v225 = vtanh.pop %v221
    %v226 = vtanh.pop %v222
    %vm227 = vcmask 261120
    %v229 = vsel %vm227, %v81, 0
    %231 = vmatprep.subr.mxu0 0.0
    %232 = vmatpush1.msra.mxu0 %v223
    %233 = vmatprep.subr.mxu0 0.0
    %234 = vmatpush1.msra.mxu0 %v224
    %235 = vmatprep.subr.mxu0 0.0
    %236 = vmatpush1.msra.mxu0 %v225
    %237 = vmatprep.subr.mxu0 0.0
    %238 = vmatpush1.msra.mxu0 %v226
    %239 = vmatprep.subr.mxu0 0.0
    %240 = vmatpush1.msra.mxu0 0.0
    %241 = vmatprep.subr.mxu0 0.0
    %242 = vmatpush1.msra.mxu0 0.0
    %243 = vmatprep.subr.mxu0 0.0
    %244 = vmatpush1.msra.mxu0 0.0
    %245 = vmatprep.subr.mxu0 0.0
    %246 = vmatpush1.msra.mxu0 0.0
    %247 = vmatprep.subr.mxu0 0.0
    %248 = vmatpush1.msra.mxu0 0.0
    %249 = vmatprep.subr.mxu0 0.0
    %250 = vmatpush1.msra.mxu0 0.0
    %251 = vmatprep.subr.mxu0 0.0
    %252 = vmatpush1.msra.mxu0 0.0
    %253 = vmatprep.subr.mxu0 0.0
    %254 = vmatpush1.msra.mxu0 0.0
    %255 = vmatprep.subr.mxu0 0.0
    %256 = vmatpush1.msra.mxu0 0.0
    %257 = vmatprep.subr.mxu0 0.0
    %258 = vmatpush1.msra.mxu0 0.0
    %259 = vmatprep.subr.mxu0 0.0
    %260 = vmatpush1.msra.mxu0 0.0
    %261 = vmatprep.subr.mxu0 0.0
    %262 = vmatpush1.msra.mxu0 0.0
    %263 = vmatprep.subr.mxu0 0.0
    %264 = vmatpush1.msra.mxu0 0.0
    %265 = vmatprep.subr.mxu0 0.0
    %266 = vmatpush1.msra.mxu0 0.0
    %267 = vmatprep.subr.mxu0 0.0
    %268 = vmatpush1.msra.mxu0 0.0
    %269 = vmatprep.subr.mxu0 0.0
    %270 = vmatpush1.msra.mxu0 0.0
    %271 = vmatprep.subr.mxu0 0.0
    %272 = vmatpush1.msra.mxu0 0.0
    %273 = vmatprep.subr.mxu0 0.0
    %274 = vmatpush1.msra.mxu0 0.0
    %275 = vmatprep.subr.mxu0 0.0
    %276 = vmatpush1.msra.mxu0 0.0
    %277 = vmatprep.subr.mxu0 0.0
    %278 = vmatpush1.msra.mxu0 0.0
    %279 = vmatprep.subr.mxu0 0.0
    %280 = vmatpush1.msra.mxu0 0.0
    %281 = vmatprep.subr.mxu0 0.0
    %282 = vmatpush1.msra.mxu0 0.0
    %283 = vmatprep.subr.mxu0 0.0
    %284 = vmatpush1.msra.mxu0 0.0
    %285 = vmatprep.subr.mxu0 0.0
    %286 = vmatpush1.msra.mxu0 0.0
    %287 = vmatprep.subr.mxu0 0.0
    %288 = vmatpush1.msra.mxu0 0.0
    %289 = vmatprep.subr.mxu0 0.0
    %290 = vmatpush1.msra.mxu0 0.0
    %291 = vmatprep.subr.mxu0 0.0
    %292 = vmatpush1.msra.mxu0 0.0
    %293 = vmatprep.subr.mxu0 0.0
    %294 = vmatpush1.msra.mxu0 0.0
    %295 = vmatprep.mubr.f32.mxu0 0.0
    %296 = vmatmul.mubr.f32.gmra.mrb[0].mxu0 %v229
    %v297 = vpop.f32.mrb[0].mxu0
    %v298 = vadd.f32 0.0, %v297
    %v299 = vpop.f32.mrb[0].mxu0
    %300 = vdwg.mxu0
    %v301 = vadd.f32 %v198, %v298
    %302 = vst [vmem:[#allocation3] sm:$0xf] %v301
    // Predicated region
    $region34: #{hybrid_ode_forward_cols.1} parent=1 // pred_check
      _
    $region35: #{hybrid_ode_forward_cols.1} parent=1 // pred_check_branch
      %304 = sbr.rel (0) target = $region37
    $region36: #{hybrid_ode_forward_cols.1} parent=1 // pred_region
      %s306 = ssub.s32 64, 64
      %307 = vsyncadd [#allocation4], %s306
      %s309 = sshll.u32 [#allocation3], 4
      %s310 = int_to_ptr.vmem [resolvable:$true] %s309
      %312 = dma.vmem_to_hbm [thread:$0]  %s310, 64, %s8, [#allocation4]
    $region37: #{hybrid_ode_forward_cols.1} parent=1 // pred_fallthru
      _
    // Predicated region
    $region38: #{hybrid_ode_forward_cols.1} parent=1 // pred_check
      _
    $region39: #{hybrid_ode_forward_cols.1} parent=1 // pred_check_branch
      %314 = sbr.rel (0) target = $region41
    $region40: #{hybrid_ode_forward_cols.1} parent=1 // pred_region
      %315 = dma.done [#allocation4], 64
    $region41: #{hybrid_ode_forward_cols.1} parent=1 // pred_fallthru
      _
    %316 = vsyncpa [#allocation4], 1

</llo_original>
